<compile_context>
chip_gen: v7x
topology: tpu7x:2x2x1
jax: 0.10.0
libtpu: 0.0.40
codegen_flags: <defaults>
</compile_context>

<pallas_src>
import functools

import jax
import jax.numpy as jnp
from jax import lax
from jax.experimental import pallas as pl
from jax.experimental.pallas import tpu as pltpu


def _residual_block_kernel(x_ref, mask_ref, w1_ref, b1_ref, w2_ref, b2_ref,
                           o_ref, *, W):
    """One image per grid step; spatial dims flattened onto the 128-lane axis.

    x_ref    : (1, C, H*W)   input image (conv input + residual path)
    mask_ref : (9*C, H*W)    zero-padding mask for the 9 conv taps (f32 0/1)
    w1_ref   : (C, 9*C)      conv1 weight with BN1 scale folded in (row = out chan)
    b1_ref   : (C, 1)        folded BN1 bias
    w2_ref   : (C, 9*C)      conv2 weight with BN2 scale folded in
    b2_ref   : (C, 1)        folded BN2 bias
    o_ref    : (1, C, H*W)   output
    """
    x = x_ref[0]                        # (C, H*W), lanes = H*W (dense)
    mask = mask_ref[...]                # (9*C, H*W)
    hw = x.shape[-1]

    def conv3x3_bn(inp, w):
        # im2col along the sublane axis: 9 shifted copies of the (C, H*W) plane.
        # Shifts are circular lane rolls (XLU); out-of-image reads are zeroed by
        # the precomputed mask (equivalent to padding=1 zero padding).
        planes = []
        for dy in (-1, 0, 1):
            for dx in (-1, 0, 1):
                s = dy * W + dx         # flat-index offset of this tap
                if s == 0:
                    planes.append(inp)
                else:
                    planes.append(pltpu.roll(inp, shift=(-s) % hw, axis=1))
        patch = jnp.concatenate(planes, axis=0) * mask        # (9*C, H*W)
        # One MXU matmul per conv; lane-dense (C, H*W) output.
        return jnp.dot(w, patch, preferred_element_type=jnp.float32)

    h = conv3x3_bn(x, w1_ref[...]) + b1_ref[...]              # conv1 + BN1 (folded)
    h = jnp.maximum(h, 0.0)                                   # ReLU
    y = conv3x3_bn(h, w2_ref[...]) + b2_ref[...]              # conv2 + BN2 (folded)
    o_ref[0] = (x + y).astype(o_ref.dtype)                    # residual add


def residual_block_pallas(x_nchw, params, eps=1e-5):
    (w1, g1, be1, m1, v1, w2, g2, be2, m2, v2) = params
    N, C, H, W = x_nchw.shape
    HW = H * W

    # Free reshape only - no transpose, no pad, single HBM stream into the kernel.
    x = x_nchw.reshape(N, C, HW).astype(jnp.float32)

    def fold(w, g, b, m, v):
        s = (g / jnp.sqrt(v + eps)).astype(jnp.float32)       # (C,) BN scale
        # OIHW -> (O, KH, KW, I) -> (O, 9*I); column order matches the kernel's
        # (dy outer, dx inner, channel fastest) patch stacking order.
        wf = jnp.transpose(w, (0, 2, 3, 1)).reshape(C, 9 * C).astype(jnp.float32)
        wf = wf * s[:, None]                                   # fold BN scale into weights
        bf = (b - m * s).astype(jnp.float32).reshape(C, 1)     # folded BN bias
        return wf, bf

    w1f, b1f = fold(w1, g1, be1, m1, v1)
    w2f, b2f = fold(w2, g2, be2, m2, v2)

    # Zero-padding masks for the 9 taps (depend only on H, W -> constant-folded by XLA).
    pos = jnp.arange(HW, dtype=jnp.int32)
    row, col = pos // W, pos % W
    taps = []
    for dy in (-1, 0, 1):
        for dx in (-1, 0, 1):
            taps.append((row + dy >= 0) & (row + dy < H) &
                        (col + dx >= 0) & (col + dx < W))
    mask = jnp.stack(taps)                                     # (9, HW) bool
    mask = jnp.broadcast_to(mask[:, None, :], (9, C, HW))
    mask = mask.reshape(9 * C, HW).astype(jnp.float32)

    kernel = functools.partial(_residual_block_kernel, W=W)

    out = pl.pallas_call(
        kernel,
        out_shape=jax.ShapeDtypeStruct((N, C, HW), jnp.float32),
        grid_spec=pltpu.PrefetchScalarGridSpec(
            num_scalar_prefetch=0,
            grid=(N,),
            in_specs=[
                pl.BlockSpec((1, C, HW), lambda n: (n, 0, 0)),     # x (one image)
                pl.BlockSpec((9 * C, HW), lambda n: (0, 0)),       # tap masks
                pl.BlockSpec((C, 9 * C), lambda n: (0, 0)),        # w1 (BN1 folded)
                pl.BlockSpec((C, 1), lambda n: (0, 0)),            # b1
                pl.BlockSpec((C, 9 * C), lambda n: (0, 0)),        # w2 (BN2 folded)
                pl.BlockSpec((C, 1), lambda n: (0, 0)),            # b2
            ],
            out_specs=pl.BlockSpec((1, C, HW), lambda n: (n, 0, 0)),
        ),
        compiler_params=pltpu.CompilerParams(
            dimension_semantics=("parallel",)),                    # v7x: use both TCs
    )(x, mask, w1f, b1f, w2f, b2f)

    return out.reshape(N, C, H, W)                                 # free reshape


def residual_block_ref(x, params, eps=1e-5):
    """Pure-JAX reference (NCHW, matches PyTorch eval-mode forward)."""
    (w1, g1, be1, m1, v1, w2, g2, be2, m2, v2) = params

    def bn(h, g, b, m, v):
        g = g[None, :, None, None]
        b = b[None, :, None, None]
        m = m[None, :, None, None]
        v = v[None, :, None, None]
        return g * (h - m) / jnp.sqrt(v + eps) + b

    h = lax.conv_general_dilated(x, w1, (1, 1), "SAME",
                                 dimension_numbers=("NCHW", "OIHW", "NCHW"))
    h = jnp.maximum(bn(h, g1, be1, m1, v1), 0.0)
    h = lax.conv_general_dilated(h, w2, (1, 1), "SAME",
                                 dimension_numbers=("NCHW", "OIHW", "NCHW"))
    return x + bn(h, g2, be2, m2, v2)


if __name__ == "__main__":
    N, C, H, W = 2, 4, 16, 16

    key = jax.random.PRNGKey(0)
    keys = jax.random.split(key, 11)

    x = jax.random.normal(keys[0], (N, C, H, W), jnp.float32)

    w1 = jax.random.normal(keys[1], (C, C, 3, 3), jnp.float32) * 0.2
    g1 = jax.random.normal(keys[2], (C,), jnp.float32) * 0.1 + 1.0
    be1 = jax.random.normal(keys[3], (C,), jnp.float32) * 0.1
    m1 = jax.random.normal(keys[4], (C,), jnp.float32) * 0.1
    v1 = jnp.abs(jax.random.normal(keys[5], (C,), jnp.float32)) * 0.5 + 0.5

    w2 = jax.random.normal(keys[6], (C, C, 3, 3), jnp.float32) * 0.2
    g2 = jax.random.normal(keys[7], (C,), jnp.float32) * 0.1 + 1.0
    be2 = jax.random.normal(keys[8], (C,), jnp.float32) * 0.1
    m2 = jax.random.normal(keys[9], (C,), jnp.float32) * 0.1
    v2 = jnp.abs(jax.random.normal(keys[10], (C,), jnp.float32)) * 0.5 + 0.5

    params = (w1, g1, be1, m1, v1, w2, g2, be2, m2, v2)

    out = jax.block_until_ready(residual_block_pallas(x, params))
    ref = jax.block_until_ready(residual_block_ref(x, params))

    assert out.shape == (N, C, H, W)
    assert jnp.allclose(out, ref, atol=1e-4, rtol=1e-4), float(jnp.max(jnp.abs(out - ref)))

    print("KERNEL_OK")
</pallas_src>

<mosaic_0001>
module attributes {stable_mosaic.version = 11 : i64} {
  func.func @_residual_block_kernel(%arg0: i32, %arg1: memref<1x4x256xf32, #tpu.memory_space<vmem>>, %arg2: memref<36x256xf32, #tpu.memory_space<vmem>>, %arg3: memref<4x36xf32, #tpu.memory_space<vmem>>, %arg4: memref<4x1xf32, #tpu.memory_space<vmem>>, %arg5: memref<4x36xf32, #tpu.memory_space<vmem>>, %arg6: memref<4x1xf32, #tpu.memory_space<vmem>>, %arg7: memref<1x4x256xf32, #tpu.memory_space<vmem>>) attributes {dimension_semantics = [#tpu.dimension_semantics<parallel>], iteration_bounds = array<i64: 2>, scalar_prefetch = 0 : i64, scratch_operands = 0 : i64, tpu.core_type = #tpu.core_type<tc>, window_params = [{transform_indices = @transform_0, window_bounds = array<i64: 1, 4, 256>}, {pipeline_mode = #tpu.pipeline_mode<synchronous>, transform_indices = @transform_1, window_bounds = array<i64: 36, 256>}, {pipeline_mode = #tpu.pipeline_mode<synchronous>, transform_indices = @transform_2, window_bounds = array<i64: 4, 36>}, {pipeline_mode = #tpu.pipeline_mode<synchronous>, transform_indices = @transform_3, window_bounds = array<i64: 4, 1>}, {pipeline_mode = #tpu.pipeline_mode<synchronous>, transform_indices = @transform_4, window_bounds = array<i64: 4, 36>}, {pipeline_mode = #tpu.pipeline_mode<synchronous>, transform_indices = @transform_5, window_bounds = array<i64: 4, 1>}, {transform_indices = @transform_6, window_bounds = array<i64: 1, 4, 256>}]} {
    %c0 = arith.constant 0 : index
    %c0_0 = arith.constant 0 : index
    %c0_1 = arith.constant 0 : index
    %0 = vector.load %arg1[%c0, %c0_0, %c0_1] : memref<1x4x256xf32, #tpu.memory_space<vmem>>, vector<1x4x256xf32>
    %1 = vector.shape_cast %0 : vector<1x4x256xf32> to vector<4x256xf32>
    %c0_2 = arith.constant 0 : index
    %c0_3 = arith.constant 0 : index
    %2 = vector.load %arg2[%c0_2, %c0_3] : memref<36x256xf32, #tpu.memory_space<vmem>>, vector<36x256xf32>
    %c0_4 = arith.constant 0 : index
    %c0_5 = arith.constant 0 : index
    %3 = vector.load %arg3[%c0_4, %c0_5] : memref<4x36xf32, #tpu.memory_space<vmem>>, vector<4x36xf32>
    %c17_i32 = arith.constant 17 : i32
    %4 = tpu.dynamic_rotate %1 by %c17_i32 dim 1 : vector<4x256xf32>, i32 -> vector<4x256xf32>
    %c16_i32 = arith.constant 16 : i32
    %5 = tpu.dynamic_rotate %1 by %c16_i32 dim 1 : vector<4x256xf32>, i32 -> vector<4x256xf32>
    %c15_i32 = arith.constant 15 : i32
    %6 = tpu.dynamic_rotate %1 by %c15_i32 dim 1 : vector<4x256xf32>, i32 -> vector<4x256xf32>
    %c1_i32 = arith.constant 1 : i32
    %7 = tpu.dynamic_rotate %1 by %c1_i32 dim 1 : vector<4x256xf32>, i32 -> vector<4x256xf32>
    %c255_i32 = arith.constant 255 : i32
    %8 = tpu.dynamic_rotate %1 by %c255_i32 dim 1 : vector<4x256xf32>, i32 -> vector<4x256xf32>
    %c241_i32 = arith.constant 241 : i32
    %9 = tpu.dynamic_rotate %1 by %c241_i32 dim 1 : vector<4x256xf32>, i32 -> vector<4x256xf32>
    %c240_i32 = arith.constant 240 : i32
    %10 = tpu.dynamic_rotate %1 by %c240_i32 dim 1 : vector<4x256xf32>, i32 -> vector<4x256xf32>
    %c239_i32 = arith.constant 239 : i32
    %11 = tpu.dynamic_rotate %1 by %c239_i32 dim 1 : vector<4x256xf32>, i32 -> vector<4x256xf32>
    %12 = tpu.concatenate %4, %5, %6, %7, %1, %8, %9, %10, %11 in 0 : vector<4x256xf32>, vector<4x256xf32>, vector<4x256xf32>, vector<4x256xf32>, vector<4x256xf32>, vector<4x256xf32>, vector<4x256xf32>, vector<4x256xf32>, vector<4x256xf32> -> vector<36x256xf32>
    %13 = arith.mulf %12, %2 : vector<36x256xf32>
    %cst = arith.constant dense<0.000000e+00> : vector<4x256xf32>
    %14 = tpu.matmul %3, %13, %cst {dimension_numbers = #tpu.dot_dimension_numbers<[1], [0], [0], [1], [0, 0, 1, 1], [], []>} : vector<4x36xf32>, vector<36x256xf32>, vector<4x256xf32> -> vector<4x256xf32>
    %c0_6 = arith.constant 0 : index
    %c0_7 = arith.constant 0 : index
    %15 = vector.load %arg4[%c0_6, %c0_7] : memref<4x1xf32, #tpu.memory_space<vmem>>, vector<4x1xf32>
    %16 = vector.broadcast %15 : vector<4x1xf32> to vector<4x256xf32>
    %17 = arith.addf %14, %16 : vector<4x256xf32>
    %cst_8 = arith.constant 0.000000e+00 : f32
    %18 = vector.broadcast %cst_8 : f32 to vector<4x256xf32>
    %19 = arith.maximumf %17, %18 : vector<4x256xf32>
    %c0_9 = arith.constant 0 : index
    %c0_10 = arith.constant 0 : index
    %20 = vector.load %arg5[%c0_9, %c0_10] : memref<4x36xf32, #tpu.memory_space<vmem>>, vector<4x36xf32>
    %c17_i32_11 = arith.constant 17 : i32
    %21 = tpu.dynamic_rotate %19 by %c17_i32_11 dim 1 : vector<4x256xf32>, i32 -> vector<4x256xf32>
    %c16_i32_12 = arith.constant 16 : i32
    %22 = tpu.dynamic_rotate %19 by %c16_i32_12 dim 1 : vector<4x256xf32>, i32 -> vector<4x256xf32>
    %c15_i32_13 = arith.constant 15 : i32
    %23 = tpu.dynamic_rotate %19 by %c15_i32_13 dim 1 : vector<4x256xf32>, i32 -> vector<4x256xf32>
    %c1_i32_14 = arith.constant 1 : i32
    %24 = tpu.dynamic_rotate %19 by %c1_i32_14 dim 1 : vector<4x256xf32>, i32 -> vector<4x256xf32>
    %c255_i32_15 = arith.constant 255 : i32
    %25 = tpu.dynamic_rotate %19 by %c255_i32_15 dim 1 : vector<4x256xf32>, i32 -> vector<4x256xf32>
    %c241_i32_16 = arith.constant 241 : i32
    %26 = tpu.dynamic_rotate %19 by %c241_i32_16 dim 1 : vector<4x256xf32>, i32 -> vector<4x256xf32>
    %c240_i32_17 = arith.constant 240 : i32
    %27 = tpu.dynamic_rotate %19 by %c240_i32_17 dim 1 : vector<4x256xf32>, i32 -> vector<4x256xf32>
    %c239_i32_18 = arith.constant 239 : i32
    %28 = tpu.dynamic_rotate %19 by %c239_i32_18 dim 1 : vector<4x256xf32>, i32 -> vector<4x256xf32>
    %29 = tpu.concatenate %21, %22, %23, %24, %19, %25, %26, %27, %28 in 0 : vector<4x256xf32>, vector<4x256xf32>, vector<4x256xf32>, vector<4x256xf32>, vector<4x256xf32>, vector<4x256xf32>, vector<4x256xf32>, vector<4x256xf32>, vector<4x256xf32> -> vector<36x256xf32>
    %30 = arith.mulf %29, %2 : vector<36x256xf32>
    %cst_19 = arith.constant dense<0.000000e+00> : vector<4x256xf32>
    %31 = tpu.matmul %20, %30, %cst_19 {dimension_numbers = #tpu.dot_dimension_numbers<[1], [0], [0], [1], [0, 0, 1, 1], [], []>} : vector<4x36xf32>, vector<36x256xf32>, vector<4x256xf32> -> vector<4x256xf32>
    %c0_20 = arith.constant 0 : index
    %c0_21 = arith.constant 0 : index
    %32 = vector.load %arg6[%c0_20, %c0_21] : memref<4x1xf32, #tpu.memory_space<vmem>>, vector<4x1xf32>
    %33 = vector.broadcast %32 : vector<4x1xf32> to vector<4x256xf32>
    %34 = arith.addf %31, %33 : vector<4x256xf32>
    %35 = arith.addf %1, %34 : vector<4x256xf32>
    %c0_22 = arith.constant 0 : index
    %c0_23 = arith.constant 0 : index
    %c0_24 = arith.constant 0 : index
    %36 = vector.load %arg7[%c0_22, %c0_23, %c0_24] : memref<1x4x256xf32, #tpu.memory_space<vmem>>, vector<1x4x256xf32>
    %37 = vector.shape_cast %36 : vector<1x4x256xf32> to vector<4x256xf32>
    %38 = vector.shape_cast %35 : vector<4x256xf32> to vector<1x4x256xf32>
    tpu.vector_store %arg7[%c0_22, %c0_23, %c0_24], %38 {strides = array<i32>} : memref<1x4x256xf32, #tpu.memory_space<vmem>>, vector<1x4x256xf32>,
    return
  }
  func.func @transform_0(%arg0: i32) -> (i32, i32, i32) {
    %c0_i32 = arith.constant 0 : i32
    %c0_i32_0 = arith.constant 0 : i32
    %c0_i32_1 = arith.constant 0 : i32
    return %arg0, %c0_i32, %c0_i32_0 : i32, i32, i32
  }
  func.func @transform_1(%arg0: i32) -> (i32, i32) {
    %c0_i32 = arith.constant 0 : i32
    %c0_i32_0 = arith.constant 0 : i32
    %c0_i32_1 = arith.constant 0 : i32
    return %c0_i32, %c0_i32_0 : i32, i32
  }
  func.func @transform_2(%arg0: i32) -> (i32, i32) {
    %c0_i32 = arith.constant 0 : i32
    %c0_i32_0 = arith.constant 0 : i32
    %c0_i32_1 = arith.constant 0 : i32
    return %c0_i32, %c0_i32_0 : i32, i32
  }
  func.func @transform_3(%arg0: i32) -> (i32, i32) {
    %c0_i32 = arith.constant 0 : i32
    %c0_i32_0 = arith.constant 0 : i32
    %c0_i32_1 = arith.constant 0 : i32
    return %c0_i32, %c0_i32_0 : i32, i32
  }
  func.func @transform_4(%arg0: i32) -> (i32, i32) {
    %c0_i32 = arith.constant 0 : i32
    %c0_i32_0 = arith.constant 0 : i32
    %c0_i32_1 = arith.constant 0 : i32
    return %c0_i32, %c0_i32_0 : i32, i32
  }
  func.func @transform_5(%arg0: i32) -> (i32, i32) {
    %c0_i32 = arith.constant 0 : i32
    %c0_i32_0 = arith.constant 0 : i32
    %c0_i32_1 = arith.constant 0 : i32
    return %c0_i32, %c0_i32_0 : i32, i32
  }
  func.func @transform_6(%arg0: i32) -> (i32, i32, i32) {
    %c0_i32 = arith.constant 0 : i32
    %c0_i32_0 = arith.constant 0 : i32
    %c0_i32_1 = arith.constant 0 : i32
    return %arg0, %c0_i32, %c0_i32_0 : i32, i32, i32
  }
}

</mosaic_0001>

<llo_original>
// kernel: tpu_custom_call.1
$region0: #{tpu_custom_call.1}
  #allocation0 [shape = 'u32[]', space=smem, size = 0x4, offset = 0x4, fixed_abs, tag = 'smem constant byte address 0x4 - core index']
  #allocation1 [shape = 'u32[144,128]{1,0:T(1,128)}', space=vmem, size = 0x12000, scoped, tag = 'internal scratch']
  %s0 = inlined_call_operand.hbm [shape: f32[2,4,256], index: 0, kind: input, shape index: {}]
  %s1 = inlined_call_operand.hbm [shape: f32[36,256], index: 1, kind: input, shape index: {}]
  %s2 = inlined_call_operand.vmem [shape: f32[4,36], index: 2, kind: input, shape index: {}]
  %s3 = inlined_call_operand.vmem [shape: f32[4,1], index: 3, kind: input, shape index: {}]
  %s4 = inlined_call_operand.vmem [shape: f32[4,36], index: 4, kind: input, shape index: {}]
  %s5 = inlined_call_operand.vmem [shape: f32[4,1], index: 5, kind: input, shape index: {}]
  %s6 = inlined_call_operand.hbm [shape: f32[2,4,256], index: 6, kind: output, shape index: {}]
  %s7 = sld [smem:[#allocation0]]
  $region65: #{tpu_custom_call.1} parent=0
    _
  %s9 = ssub.s32 1, %s7
  %s10 = scalar_select 0, %s9, %s7
  $region1: #{tpu_custom_call.1} parent=0
    #allocation2 [shape = 'u8[8192]{0}', space=vmem, size = 0x2000, scoped, tag = 'input window, operand 0']
    #allocation3 [shape = 's32[2]{0}', space=sflag, size = 0x8, scoped, tag = 'scoped memory for tpu_custom_call.1']
    #allocation4 [shape = 's32[2]{0}', space=sflag, size = 0x8, scoped, tag = 'scoped memory for tpu_custom_call.1']
    #allocation5 [shape = 'u8[40960]{0}', space=vmem, size = 0xa000, scoped, tag = 'input window, operand 1, single buffered']
    #allocation6 [shape = 's32[1]{0}', space=sflag, size = 0x4, scoped, tag = 'scoped memory for tpu_custom_call.1']
    #allocation7 [shape = 'u8[8192]{0}', space=vmem, size = 0x2000, scoped, tag = 'output window, operand 0']
    %11 = vsyncpa [#allocation3], 0
    %s12 = scalar_lea.sflag [#allocation3], 1
    %13 = vsyncpa %s12, 0
    %14 = vsyncpa [#allocation6], 0
    %15 = vsyncpa [#allocation4], 0
    %s16 = scalar_lea.sflag [#allocation4], 1
    %17 = vsyncpa %s16, 0
    loop: start=0, step=1, limit=4
    $region2: #{tpu_custom_call.1} parent=1 // loop_pre_header
      _
    $region3: #{tpu_custom_call.1} parent=1 // loop_header
      %s19 = sphi 0, %s23
      %p20 = scmp.ge.s32.totalorder %s19, 4
      %s29 = sphi 0, %s31
      %s32 = sphi 0, %s29
      %s33 = sphi 0, %s32
      %s49 = sphi 0, %s33
      %s53 = sphi 0, %s53
      %s55 = sphi 0, %s53
      %s56 = sphi 0, %s55
      %s70 = sphi 0, %s56
      %s74 = sphi 0, %s74
      %s76 = sphi 0, %s74
      %s77 = sphi 0, %s76
      %s91 = sphi 0, %s77
      %s95 = sphi 0, %s95
      %s97 = sphi 0, %s95
      %s98 = sphi 0, %s97
      %s112 = sphi 0, %s98
      %s116 = sphi 0, %s116
      %s118 = sphi 0, %s116
      %s119 = sphi 0, %s118
      %s133 = sphi 0, %s119
      %s137 = sphi 0, %s137
      %s139 = sphi 0, %s137
      %s140 = sphi 0, %s139
      %s154 = sphi 0, %s140
      %s160 = sphi 0, %s162
      %s163 = sphi 0, %s160
      %s164 = sphi 0, %s163
      %s180 = sphi 0, %s164
    $region4: #{tpu_custom_call.1} parent=1 // loop_header_branch
      %22 = sbr.rel (%p20) target = $region8
    $region5: #{tpu_custom_call.1} parent=1 // loop_body
      %s24 = ssub.s32 %s19, 1
      %s25 = ssub.s32 %s19, 2
      %s26 = sadd.s32 %s19, 1
      %s27 = ssub.s32 %s19, %s26
      %p28 = scmp.eq.s32.totalorder %s27, 0
      %s30 = sadd.s32 %s29, 1
      %s31 = scalar_select %p28, %s29, %s30
      %p34 = pneg %p28
      %p35 = scmp.eq.s32.totalorder %s19, 1
      %p36 = por %p34, %p35
      %p37 = scmp.ne.s32.totalorder %s29, %s32
      %p38 = scmp.eq.s32.totalorder %s19, 0
      %p39 = por %p37, %p38
      %p40 = scmp.ne.s32.totalorder %s29, %s32
      %p41 = scmp.eq.s32.totalorder %s24, 1
      %p42 = por %p40, %p41
      %p43 = scmp.ne.s32.totalorder %s32, %s33
      %p44 = scmp.eq.s32.totalorder %s24, 0
      %p45 = por %p43, %p44
      %p46 = scmp.ne.s32.totalorder %s32, %s33
      %p47 = scmp.eq.s32.totalorder %s25, 1
      %p48 = por %p46, %p47
      %p50 = scmp.ne.s32.totalorder %s33, %s49
      %p51 = scmp.eq.s32.totalorder %s25, 0
      %p52 = por %p50, %p51
      %s54 = sadd.s32 %s53, 1
      %p57 = scmp.eq.s32.totalorder %s19, 1
      %p58 = scmp.ne.s32.totalorder %s53, %s55
      %p59 = scmp.eq.s32.totalorder %s19, 0
      %p60 = por %p58, %p59
      %p61 = scmp.ne.s32.totalorder %s53, %s55
      %p62 = scmp.eq.s32.totalorder %s24, 1
      %p63 = por %p61, %p62
      %p64 = scmp.ne.s32.totalorder %s55, %s56
      %p65 = scmp.eq.s32.totalorder %s24, 0
      %p66 = por %p64, %p65
      %p67 = scmp.ne.s32.totalorder %s55, %s56
      %p68 = scmp.eq.s32.totalorder %s25, 1
      %p69 = por %p67, %p68
      %p71 = scmp.ne.s32.totalorder %s56, %s70
      %p72 = scmp.eq.s32.totalorder %s25, 0
      %p73 = por %p71, %p72
      %s75 = sadd.s32 %s74, 1
      %p78 = scmp.eq.s32.totalorder %s19, 1
      %p79 = scmp.ne.s32.totalorder %s74, %s76
      %p80 = scmp.eq.s32.totalorder %s19, 0
      %p81 = por %p79, %p80
      %p82 = scmp.ne.s32.totalorder %s74, %s76
      %p83 = scmp.eq.s32.totalorder %s24, 1
      %p84 = por %p82, %p83
      %p85 = scmp.ne.s32.totalorder %s76, %s77
      %p86 = scmp.eq.s32.totalorder %s24, 0
      %p87 = por %p85, %p86
      %p88 = scmp.ne.s32.totalorder %s76, %s77
      %p89 = scmp.eq.s32.totalorder %s25, 1
      %p90 = por %p88, %p89
      %p92 = scmp.ne.s32.totalorder %s77, %s91
      %p93 = scmp.eq.s32.totalorder %s25, 0
      %p94 = por %p92, %p93
      %s96 = sadd.s32 %s95, 1
      %p99 = scmp.eq.s32.totalorder %s19, 1
      %p100 = scmp.ne.s32.totalorder %s95, %s97
      %p101 = scmp.eq.s32.totalorder %s19, 0
      %p102 = por %p100, %p101
      %p103 = scmp.ne.s32.totalorder %s95, %s97
      %p104 = scmp.eq.s32.totalorder %s24, 1
      %p105 = por %p103, %p104
      %p106 = scmp.ne.s32.totalorder %s97, %s98
      %p107 = scmp.eq.s32.totalorder %s24, 0
      %p108 = por %p106, %p107
      %p109 = scmp.ne.s32.totalorder %s97, %s98
      %p110 = scmp.eq.s32.totalorder %s25, 1
      %p111 = por %p109, %p110
      %p113 = scmp.ne.s32.totalorder %s98, %s112
      %p114 = scmp.eq.s32.totalorder %s25, 0
      %p115 = por %p113, %p114
      %s117 = sadd.s32 %s116, 1
      %p120 = scmp.eq.s32.totalorder %s19, 1
      %p121 = scmp.ne.s32.totalorder %s116, %s118
      %p122 = scmp.eq.s32.totalorder %s19, 0
      %p123 = por %p121, %p122
      %p124 = scmp.ne.s32.totalorder %s116, %s118
      %p125 = scmp.eq.s32.totalorder %s24, 1
      %p126 = por %p124, %p125
      %p127 = scmp.ne.s32.totalorder %s118, %s119
      %p128 = scmp.eq.s32.totalorder %s24, 0
      %p129 = por %p127, %p128
      %p130 = scmp.ne.s32.totalorder %s118, %s119
      %p131 = scmp.eq.s32.totalorder %s25, 1
      %p132 = por %p130, %p131
      %p134 = scmp.ne.s32.totalorder %s119, %s133
      %p135 = scmp.eq.s32.totalorder %s25, 0
      %p136 = por %p134, %p135
      %s138 = sadd.s32 %s137, 1
      %p141 = scmp.eq.s32.totalorder %s19, 1
      %p142 = scmp.ne.s32.totalorder %s137, %s139
      %p143 = scmp.eq.s32.totalorder %s19, 0
      %p144 = por %p142, %p143
      %p145 = scmp.ne.s32.totalorder %s137, %s139
      %p146 = scmp.eq.s32.totalorder %s24, 1
      %p147 = por %p145, %p146
      %p148 = scmp.ne.s32.totalorder %s139, %s140
      %p149 = scmp.eq.s32.totalorder %s24, 0
      %p150 = por %p148, %p149
      %p151 = scmp.ne.s32.totalorder %s139, %s140
      %p152 = scmp.eq.s32.totalorder %s25, 1
      %p153 = por %p151, %p152
      %p155 = scmp.ne.s32.totalorder %s140, %s154
      %p156 = scmp.eq.s32.totalorder %s25, 0
      %p157 = por %p155, %p156
      %s158 = ssub.s32 %s19, %s26
      %p159 = scmp.eq.s32.totalorder %s158, 0
      %s161 = sadd.s32 %s160, 1
      %s162 = scalar_select %p159, %s160, %s161
      %p165 = pneg %p159
      %p166 = scmp.eq.s32.totalorder %s19, 1
      %p167 = por %p165, %p166
      %p168 = scmp.ne.s32.totalorder %s160, %s163
      %p169 = scmp.eq.s32.totalorder %s19, 0
      %p170 = por %p168, %p169
      %p171 = scmp.ne.s32.totalorder %s160, %s163
      %p172 = scmp.eq.s32.totalorder %s24, 1
      %p173 = por %p171, %p172
      %p174 = scmp.ne.s32.totalorder %s163, %s164
      %p175 = scmp.eq.s32.totalorder %s24, 0
      %p176 = por %p174, %p175
      %p177 = scmp.ne.s32.totalorder %s163, %s164
      %p178 = scmp.eq.s32.totalorder %s25, 1
      %p179 = por %p177, %p178
      %p181 = scmp.ne.s32.totalorder %s164, %s180
      %p182 = scmp.eq.s32.totalorder %s25, 0
      %p183 = por %p181, %p182
      %p184 = scmp.le.s32.totalorder 1, %s19
      %p185 = scmp.lt.s32.totalorder %s19, 3
      %p186 = pnand %p184, %p185
      %p187 = pneg %p186
      // Predicated region
      $region9: #{tpu_custom_call.1} parent=5 // pred_check
        _
      $region10: #{tpu_custom_call.1} parent=5 // pred_check_branch
        %189 = sbr.rel (%p186) target = $region12
      $region11: #{tpu_custom_call.1} parent=5 // pred_region
        %s190 = ssub.s32 %s19, 1
        // Predicated region
        $region13: #{tpu_custom_call.1} parent=11 // pred_check
          %p191 = pneg %p66
        $region14: #{tpu_custom_call.1} parent=11 // pred_check_branch
          %193 = sbr.rel (%p191) target = $region16
        $region15: #{tpu_custom_call.1} parent=11 // pred_region
          %s195 = ssub.s32 1280, 1280
          %196 = vsyncadd [#allocation6], %s195
          %s197 = sshll.u32 [#allocation5], 4
          %s198 = int_to_ptr.vmem [resolvable:$true] %s197
          %203 = dma.hbm_to_vmem [thread:$0]  %s1, 1280, %s198, [#allocation6], 256, 256, 16
        $region16: #{tpu_custom_call.1} parent=11 // pred_fallthru
          _
        // Predicated region
        $region17: #{tpu_custom_call.1} parent=11 // pred_check
          %p204 = pneg %p87
        $region18: #{tpu_custom_call.1} parent=11 // pred_check_branch
          %206 = sbr.rel (%p204) target = $region20
        $region19: #{tpu_custom_call.1} parent=11 // pred_region
          _
        $region20: #{tpu_custom_call.1} parent=11 // pred_fallthru
          _
        // Predicated region
        $region21: #{tpu_custom_call.1} parent=11 // pred_check
          %p207 = pneg %p108
        $region22: #{tpu_custom_call.1} parent=11 // pred_check_branch
          %209 = sbr.rel (%p207) target = $region24
        $region23: #{tpu_custom_call.1} parent=11 // pred_region
          _
        $region24: #{tpu_custom_call.1} parent=11 // pred_fallthru
          _
        // Predicated region
        $region25: #{tpu_custom_call.1} parent=11 // pred_check
          %p210 = pneg %p129
        $region26: #{tpu_custom_call.1} parent=11 // pred_check_branch
          %212 = sbr.rel (%p210) target = $region28
        $region27: #{tpu_custom_call.1} parent=11 // pred_region
          _
        $region28: #{tpu_custom_call.1} parent=11 // pred_fallthru
          _
        // Predicated region
        $region29: #{tpu_custom_call.1} parent=11 // pred_check
          %p213 = pneg %p150
        $region30: #{tpu_custom_call.1} parent=11 // pred_check_branch
          %215 = sbr.rel (%p213) target = $region32
        $region31: #{tpu_custom_call.1} parent=11 // pred_region
          _
        $region32: #{tpu_custom_call.1} parent=11 // pred_fallthru
          _
      $region12: #{tpu_custom_call.1} parent=5 // pred_fallthru
        _
      %p216 = scmp.lt.s32.totalorder %s19, 2
      // Predicated region
      $region33: #{tpu_custom_call.1} parent=5 // pred_check
        %p217 = pneg %p216
      $region34: #{tpu_custom_call.1} parent=5 // pred_check_branch
        %219 = sbr.rel (%p217) target = $region36
      $region35: #{tpu_custom_call.1} parent=5 // pred_region
        // Predicated region
        $region37: #{tpu_custom_call.1} parent=35 // pred_check
          %p220 = pneg %p39
        $region38: #{tpu_custom_call.1} parent=35 // pred_check_branch
          %222 = sbr.rel (%p220) target = $region40
        $region39: #{tpu_custom_call.1} parent=35 // pred_region
          %s223 = sand.u32 %s29, 1
          %s224 = scalar_lea.sflag [#allocation3], %s223
          %s225 = sand.u32 %s29, 1
          %s226 = smul.addr %s225, 8
          %s227 = scalar_lea.vmem [#allocation2], %s226
          %s229 = ssub.s32 128, 128
          %230 = vsyncadd %s224, %s229
          %s231 = smul.addr %s19, 2
          %s232 = smul.addr %s231, 64
          %s233 = scalar_lea.hbm %s0, %s232
          %s235 = sshll.u32 %s227, 4
          %s236 = int_to_ptr.vmem [resolvable:$true] %s235
          %238 = dma.hbm_to_vmem [thread:$0]  %s233, 128, %s236, %s224
        $region40: #{tpu_custom_call.1} parent=35 // pred_fallthru
          _
      $region36: #{tpu_custom_call.1} parent=5 // pred_fallthru
        _
      %p239 = scmp.le.s32.totalorder 1, %s19
      %p240 = scmp.lt.s32.totalorder %s19, 3
      %p241 = pnand %p239, %p240
      %p242 = pneg %p241
      // Predicated region
      $region41: #{tpu_custom_call.1} parent=5 // pred_check
        _
      $region42: #{tpu_custom_call.1} parent=5 // pred_check_branch
        %244 = sbr.rel (%p241) target = $region44
      $region43: #{tpu_custom_call.1} parent=5 // pred_region
        %s245 = ssub.s32 %s19, 1
        %s246 = sand.u32 %s32, 1
        %s247 = scalar_lea.sflag [#allocation3], %s246
        %s248 = sand.u32 %s32, 1
        %s249 = smul.addr %s248, 8
        %s250 = scalar_lea.vmem [#allocation2], %s249
        // Predicated region
        $region45: #{tpu_custom_call.1} parent=43 // pred_check
          %p251 = pneg %p45
        $region46: #{tpu_custom_call.1} parent=43 // pred_check_branch
          %253 = sbr.rel (%p251) target = $region48
        $region47: #{tpu_custom_call.1} parent=43 // pred_region
          %254 = dma.done %s247, 128
        $region48: #{tpu_custom_call.1} parent=43 // pred_fallthru
          _
        // Predicated region
        $region49: #{tpu_custom_call.1} parent=43 // pred_check
          %p255 = pneg %p66
        $region50: #{tpu_custom_call.1} parent=43 // pred_check_branch
          %257 = sbr.rel (%p255) target = $region52
        $region51: #{tpu_custom_call.1} parent=43 // pred_region
          %258 = dma.done [#allocation6], 1280
        $region52: #{tpu_custom_call.1} parent=43 // pred_fallthru
          _
        %s259 = sand.u32 %s32, 1
        %s260 = scalar_lea.sflag [#allocation3], %s259
        %s261 = sand.u32 %s32, 1
        %s262 = smul.addr %s261, 8
        %s263 = scalar_lea.vmem [#allocation2], %s262
        %p264 = pneg %p45
        %p265 = pneg %p42
        %p266 = pneg %p66
        %p267 = pneg %p63
        %p268 = pneg %p87
        %p269 = pneg %p84
        %p270 = pneg %p108
        %p271 = pneg %p105
        %p272 = pneg %p129
        %p273 = pneg %p126
        %p274 = pneg %p150
        %p275 = pneg %p147
        %p276 = pneg %p176
        %p277 = pneg %p173
        %s278 = sand.u32 %s163, 1
        %s279 = scalar_lea.sflag [#allocation4], %s278
        %s280 = sand.u32 %s163, 1
        %s281 = smul.addr %s280, 8
        %s282 = scalar_lea.vmem [#allocation7], %s281
        %v283 = vld [vmem:[%s250] sm:$0xff]
        %v284 = vld [vmem:[#allocation5] sm:$0xff]
        %v285 = vld [vmem:[#allocation5 + $0x8] sm:$0xff]
        %v286 = vld [vmem:[#allocation5 + $0x10] sm:$0xff]
        %v287 = vld [vmem:[#allocation5 + $0x18] sm:$0xff]
        %v288 = vld [vmem:[#allocation5 + $0x20] sm:$0xff]
        %v289 = vld [vmem:[#allocation5 + $0x28] sm:$0xff]
        %v290 = vld [vmem:[#allocation5 + $0x30] sm:$0xff]
        %v291 = vld [vmem:[#allocation5 + $0x38] sm:$0xff]
        %v292 = vld [vmem:[#allocation5 + $0x40] sm:$0xf]
        %v293 = vld [vmem:[#allocation5 + $0x48] sm:$0xf]
        %v294 = vld [vmem:[%s2] sm:$0xf]
        %v296 = vcombine.high %v283, %v283
        %298 = vrot.lane.b32.xlu0 %v283, 17
        %v299 = vpop.permute.xlu0 %298
        %300 = vrot.lane.b32.xlu0 %v296, 17
        %v301 = vpop.permute.xlu0 %300
        %v302 = vlaneseq
        %v303 = vand.u32 %v302, 127
        %vm304 = vcmp.lt.s32.totalorder %v303, 17
        %v305 = vsel %vm304, %v299, %v301
        %v306 = vsel %vm304, %v301, %v299
        %307 = vrot.lane.b32.xlu0 %v283, 16
        %v308 = vpop.permute.xlu0 %307
        %309 = vrot.lane.b32.xlu0 %v296, 16
        %v310 = vpop.permute.xlu0 %309
        %vm311 = vcmp.lt.s32.totalorder %v303, 16
        %v312 = vsel %vm311, %v308, %v310
        %v313 = vsel %vm311, %v310, %v308
        %314 = vrot.lane.b32.xlu0 %v283, 15
        %v315 = vpop.permute.xlu0 %314
        %316 = vrot.lane.b32.xlu0 %v296, 15
        %v317 = vpop.permute.xlu0 %316
        %vm318 = vcmp.lt.s32.totalorder %v303, 15
        %v319 = vsel %vm318, %v315, %v317
        %v320 = vsel %vm318, %v317, %v315
        %321 = vrot.lane.b32.xlu0 %v283, 1
        %v322 = vpop.permute.xlu0 %321
        %323 = vrot.lane.b32.xlu0 %v296, 1
        %v324 = vpop.permute.xlu0 %323
        %vm325 = vcmp.lt.s32.totalorder %v303, 1
        %v326 = vsel %vm325, %v322, %v324
        %v327 = vsel %vm325, %v324, %v322
        %328 = vrot.lane.b32.xlu0 %v283, 127
        %v329 = vpop.permute.xlu0 %328
        %330 = vrot.lane.b32.xlu0 %v296, 127
        %v331 = vpop.permute.xlu0 %330
        %vm332 = vcmp.lt.s32.totalorder %v303, 127
        %v333 = vsel %vm332, %v329, %v331
        %v334 = vsel %vm332, %v331, %v329
        %335 = vrot.lane.b32.xlu0 %v283, 113
        %v336 = vpop.permute.xlu0 %335
        %337 = vrot.lane.b32.xlu0 %v296, 113
        %v338 = vpop.permute.xlu0 %337
        %vm339 = vcmp.lt.s32.totalorder %v303, 113
        %v340 = vsel %vm339, %v336, %v338
        %v341 = vsel %vm339, %v338, %v336
        %342 = vrot.lane.b32.xlu0 %v283, 112
        %v343 = vpop.permute.xlu0 %342
        %344 = vrot.lane.b32.xlu0 %v296, 112
        %v345 = vpop.permute.xlu0 %344
        %vm346 = vcmp.lt.s32.totalorder %v303, 112
        %v347 = vsel %vm346, %v343, %v345
        %v348 = vsel %vm346, %v345, %v343
        %349 = vrot.lane.b32.xlu0 %v283, 111
        %v350 = vpop.permute.xlu0 %349
        %351 = vrot.lane.b32.xlu0 %v296, 111
        %v352 = vpop.permute.xlu0 %351
        %vm353 = vcmp.lt.s32.totalorder %v303, 111
        %v354 = vsel %vm353, %v350, %v352
        %v355 = vsel %vm353, %v352, %v350
        %v358 = vrot.slane %v313, 4
        %v359 = vrot.slane %v312, 4
        %v364 = vrot.slane %v327, 4
        %v365 = vrot.slane %v326, 4
        %v370 = vrot.slane %v333, 4
        %v371 = vrot.slane %v334, 4
        %v376 = vrot.slane %v347, 4
        %v377 = vrot.slane %v348, 4
        %vm380 = vcmask 1043456
        %v381 = vsel %vm380, %v306, %v358
        %v382 = vsel %vm380, %v305, %v359
        %v383 = vsel %vm380, %v320, %v364
        %v384 = vsel %vm380, %v319, %v365
        %v385 = vsel %vm380, %v283, %v370
        %v386 = vsel %vm380, %v296, %v371
        %v387 = vsel %vm380, %v340, %v376
        %v388 = vsel %vm380, %v341, %v377
        %v389 = vmul.f32 %v381, %v284
        %v390 = vmul.f32 %v382, %v285
        %v391 = vmul.f32 %v383, %v286
        %v392 = vmul.f32 %v384, %v287
        %v393 = vmul.f32 %v385, %v288
        %v394 = vmul.f32 %v386, %v289
        %v395 = vmul.f32 %v387, %v290
        %v396 = vmul.f32 %v388, %v291
        %v397 = vmul.f32 %v354, %v292
        %v398 = vmul.f32 %v355, %v293
        %v399 = vld [vmem:[%s3] sm:$0xf]
        %401 = vset.pattern.permute.xlu0 0
        %402 = vperm.xlu0 %401, %v399
        %v403 = vpop.permute.xlu0 %402
        %vm405 = vcmask 293888
        %v407 = vsel %vm405, %v294, 0
        %v410 = vsel %vm380, %v397, 0
        %v413 = vsel %vm380, %v398, 0
        %415 = vmatprep.subr.mxu0 %v390
        %416 = vmatpush1.msra.mxu0 %v389
        %417 = vmatprep.subr.mxu0 %v392
        %418 = vmatpush1.msra.mxu0 %v391
        %419 = vmatprep.subr.mxu0 %v394
        %420 = vmatpush1.msra.mxu0 %v393
        %421 = vmatprep.subr.mxu0 %v396
        %422 = vmatpush1.msra.mxu0 %v395
        %423 = vmatprep.subr.mxu0 %v413
        %424 = vmatpush1.msra.mxu0 %v410
        %425 = vmatprep.subr.mxu0 0.0
        %426 = vmatpush1.msra.mxu0 0.0
        %427 = vmatprep.subr.mxu0 0.0
        %428 = vmatpush1.msra.mxu0 0.0
        %429 = vmatprep.subr.mxu0 0.0
        %430 = vmatpush1.msra.mxu0 0.0
        %431 = vmatprep.subr.mxu0 0.0
        %432 = vmatpush1.msra.mxu0 0.0
        %433 = vmatprep.subr.mxu0 0.0
        %434 = vmatpush1.msra.mxu0 0.0
        %435 = vmatprep.subr.mxu0 0.0
        %436 = vmatpush1.msra.mxu0 0.0
        %437 = vmatprep.subr.mxu0 0.0
        %438 = vmatpush1.msra.mxu0 0.0
        %439 = vmatprep.subr.mxu0 0.0
        %440 = vmatpush1.msra.mxu0 0.0
        %441 = vmatprep.subr.mxu0 0.0
        %442 = vmatpush1.msra.mxu0 0.0
        %443 = vmatprep.subr.mxu0 0.0
        %444 = vmatpush1.msra.mxu0 0.0
        %445 = vmatprep.subr.mxu0 0.0
        %446 = vmatpush1.msra.mxu0 0.0
        %447 = vmatprep.subr.mxu0 0.0
        %448 = vmatpush1.msra.mxu0 0.0
        %449 = vmatprep.subr.mxu0 0.0
        %450 = vmatpush1.msra.mxu0 0.0
        %451 = vmatprep.subr.mxu0 0.0
        %452 = vmatpush1.msra.mxu0 0.0
        %453 = vmatprep.subr.mxu0 0.0
        %454 = vmatpush1.msra.mxu0 0.0
        %455 = vmatprep.subr.mxu0 0.0
        %456 = vmatpush1.msra.mxu0 0.0
        %457 = vmatprep.subr.mxu0 0.0
        %458 = vmatpush1.msra.mxu0 0.0
        %459 = vmatprep.subr.mxu0 0.0
        %460 = vmatpush1.msra.mxu0 0.0
        %461 = vmatprep.subr.mxu0 0.0
        %462 = vmatpush1.msra.mxu0 0.0
        %463 = vmatprep.subr.mxu0 0.0
        %464 = vmatpush1.msra.mxu0 0.0
        %465 = vmatprep.subr.mxu0 0.0
        %466 = vmatpush1.msra.mxu0 0.0
        %467 = vmatprep.subr.mxu0 0.0
        %468 = vmatpush1.msra.mxu0 0.0
        %469 = vmatprep.subr.mxu0 0.0
        %470 = vmatpush1.msra.mxu0 0.0
        %471 = vmatprep.subr.mxu0 0.0
        %472 = vmatpush1.msra.mxu0 0.0
        %473 = vmatprep.subr.mxu0 0.0
        %474 = vmatpush1.msra.mxu0 0.0
        %475 = vmatprep.subr.mxu0 0.0
        %476 = vmatpush1.msra.mxu0 0.0
        %477 = vmatprep.subr.mxu0 0.0
        %478 = vmatpush1.msra.mxu0 0.0
        %479 = vmatprep.mubr.f32.mxu0 0.0
        %480 = vmatmul.mubr.f32.gmra.mrb[0].mxu0 %v407
        %v481 = vpop.f32.mrb[0].mxu0
        %v482 = vadd.f32 %v403, %v481
        %v483 = vpop.f32.mrb[0].mxu0
        %v484 = vadd.f32 %v403, %v483
        %485 = vdwg.mxu0
        %v486 = vmax.f32 %v482, 0.0
        %v487 = vmax.f32 %v484, 0.0
        %v488 = vld [vmem:[%s4] sm:$0xf]
        %489 = vrot.lane.b32.xlu0 %v486, 17
        %v490 = vpop.permute.xlu0 %489
        %491 = vrot.lane.b32.xlu0 %v487, 17
        %v492 = vpop.permute.xlu0 %491
        %v493 = vsel %vm304, %v490, %v492
        %v494 = vsel %vm304, %v492, %v490
        %495 = vrot.lane.b32.xlu0 %v486, 16
        %v496 = vpop.permute.xlu0 %495
        %497 = vrot.lane.b32.xlu0 %v487, 16
        %v498 = vpop.permute.xlu0 %497
        %v499 = vsel %vm311, %v496, %v498
        %v500 = vsel %vm311, %v498, %v496
        %501 = vrot.lane.b32.xlu0 %v486, 15
        %v502 = vpop.permute.xlu0 %501
        %503 = vrot.lane.b32.xlu0 %v487, 15
        %v504 = vpop.permute.xlu0 %503
        %v505 = vsel %vm318, %v502, %v504
        %v506 = vsel %vm318, %v504, %v502
        %507 = vrot.lane.b32.xlu0 %v486, 1
        %v508 = vpop.permute.xlu0 %507
        %509 = vrot.lane.b32.xlu0 %v487, 1
        %v510 = vpop.permute.xlu0 %509
        %v511 = vsel %vm325, %v508, %v510
        %v512 = vsel %vm325, %v510, %v508
        %513 = vrot.lane.b32.xlu0 %v486, 127
        %v514 = vpop.permute.xlu0 %513
        %515 = vrot.lane.b32.xlu0 %v487, 127
        %v516 = vpop.permute.xlu0 %515
        %v517 = vsel %vm332, %v514, %v516
        %v518 = vsel %vm332, %v516, %v514
        %519 = vrot.lane.b32.xlu0 %v486, 113
        %v520 = vpop.permute.xlu0 %519
        %521 = vrot.lane.b32.xlu0 %v487, 113
        %v522 = vpop.permute.xlu0 %521
        %v523 = vsel %vm339, %v520, %v522
        %v524 = vsel %vm339, %v522, %v520
        %525 = vrot.lane.b32.xlu0 %v486, 112
        %v526 = vpop.permute.xlu0 %525
        %527 = vrot.lane.b32.xlu0 %v487, 112
        %v528 = vpop.permute.xlu0 %527
        %v529 = vsel %vm346, %v526, %v528
        %v530 = vsel %vm346, %v528, %v526
        %531 = vrot.lane.b32.xlu0 %v486, 111
        %v532 = vpop.permute.xlu0 %531
        %533 = vrot.lane.b32.xlu0 %v487, 111
        %v534 = vpop.permute.xlu0 %533
        %v535 = vsel %vm353, %v532, %v534
        %v536 = vsel %vm353, %v534, %v532
        %v539 = vrot.slane %v500, 4
        %v540 = vrot.slane %v499, 4
        %v545 = vrot.slane %v512, 4
        %v546 = vrot.slane %v511, 4
        %v551 = vrot.slane %v517, 4
        %v552 = vrot.slane %v518, 4
        %v557 = vrot.slane %v529, 4
        %v558 = vrot.slane %v530, 4
        %v561 = vsel %vm380, %v494, %v539
        %v562 = vsel %vm380, %v493, %v540
        %v563 = vsel %vm380, %v506, %v545
        %v564 = vsel %vm380, %v505, %v546
        %v565 = vsel %vm380, %v486, %v551
        %v566 = vsel %vm380, %v487, %v552
        %v567 = vsel %vm380, %v523, %v557
        %v568 = vsel %vm380, %v524, %v558
        %v569 = vmul.f32 %v561, %v284
        %v570 = vmul.f32 %v562, %v285
        %v571 = vmul.f32 %v563, %v286
        %v572 = vmul.f32 %v564, %v287
        %v573 = vmul.f32 %v565, %v288
        %v574 = vmul.f32 %v566, %v289
        %v575 = vmul.f32 %v567, %v290
        %v576 = vmul.f32 %v568, %v291
        %v577 = vmul.f32 %v535, %v292
        %v578 = vmul.f32 %v536, %v293
        %v579 = vld [vmem:[%s5] sm:$0xf]
        %581 = vset.pattern.permute.xlu0 0
        %582 = vperm.xlu0 %581, %v579
        %v583 = vpop.permute.xlu0 %582
        %v586 = vsel %vm405, %v488, 0
        %v589 = vsel %vm380, %v577, 0
        %v592 = vsel %vm380, %v578, 0
        %594 = vmatprep.subr.mxu0 %v570
        %595 = vmatpush1.msra.mxu0 %v569
        %596 = vmatprep.subr.mxu0 %v572
        %597 = vmatpush1.msra.mxu0 %v571
        %598 = vmatprep.subr.mxu0 %v574
        %599 = vmatpush1.msra.mxu0 %v573
        %600 = vmatprep.subr.mxu0 %v576
        %601 = vmatpush1.msra.mxu0 %v575
        %602 = vmatprep.subr.mxu0 %v592
        %603 = vmatpush1.msra.mxu0 %v589
        %604 = vmatprep.subr.mxu0 0.0
        %605 = vmatpush1.msra.mxu0 0.0
        %606 = vmatprep.subr.mxu0 0.0
        %607 = vmatpush1.msra.mxu0 0.0
        %608 = vmatprep.subr.mxu0 0.0
        %609 = vmatpush1.msra.mxu0 0.0
        %610 = vmatprep.subr.mxu0 0.0
        %611 = vmatpush1.msra.mxu0 0.0
        %612 = vmatprep.subr.mxu0 0.0
        %613 = vmatpush1.msra.mxu0 0.0
        %614 = vmatprep.subr.mxu0 0.0
        %615 = vmatpush1.msra.mxu0 0.0
        %616 = vmatprep.subr.mxu0 0.0
        %617 = vmatpush1.msra.mxu0 0.0
        %618 = vmatprep.subr.mxu0 0.0
        %619 = vmatpush1.msra.mxu0 0.0
        %620 = vmatprep.subr.mxu0 0.0
        %621 = vmatpush1.msra.mxu0 0.0
        %622 = vmatprep.subr.mxu0 0.0
        %623 = vmatpush1.msra.mxu0 0.0
        %624 = vmatprep.subr.mxu0 0.0
        %625 = vmatpush1.msra.mxu0 0.0
        %626 = vmatprep.subr.mxu0 0.0
        %627 = vmatpush1.msra.mxu0 0.0
        %628 = vmatprep.subr.mxu0 0.0
        %629 = vmatpush1.msra.mxu0 0.0
        %630 = vmatprep.subr.mxu0 0.0
        %631 = vmatpush1.msra.mxu0 0.0
        %632 = vmatprep.subr.mxu0 0.0
        %633 = vmatpush1.msra.mxu0 0.0
        %634 = vmatprep.subr.mxu0 0.0
        %635 = vmatpush1.msra.mxu0 0.0
        %636 = vmatprep.subr.mxu0 0.0
        %637 = vmatpush1.msra.mxu0 0.0
        %638 = vmatprep.subr.mxu0 0.0
        %639 = vmatpush1.msra.mxu0 0.0
        %640 = vmatprep.subr.mxu0 0.0
        %641 = vmatpush1.msra.mxu0 0.0
        %642 = vmatprep.subr.mxu0 0.0
        %643 = vmatpush1.msra.mxu0 0.0
        %644 = vmatprep.subr.mxu0 0.0
        %645 = vmatpush1.msra.mxu0 0.0
        %646 = vmatprep.subr.mxu0 0.0
        %647 = vmatpush1.msra.mxu0 0.0
        %648 = vmatprep.subr.mxu0 0.0
        %649 = vmatpush1.msra.mxu0 0.0
        %650 = vmatprep.subr.mxu0 0.0
        %651 = vmatpush1.msra.mxu0 0.0
        %652 = vmatprep.subr.mxu0 0.0
        %653 = vmatpush1.msra.mxu0 0.0
        %654 = vmatprep.subr.mxu0 0.0
        %655 = vmatpush1.msra.mxu0 0.0
        %656 = vmatprep.subr.mxu0 0.0
        %657 = vmatpush1.msra.mxu0 0.0
        %658 = vmatprep.mubr.f32.mxu0 0.0
        %659 = vmatmul.mubr.f32.gmra.mrb[0].mxu0 %v586
        %v660 = vpop.f32.mrb[0].mxu0
        %v661 = vadd.f32 %v583, %v660
        %v662 = vpop.f32.mrb[0].mxu0
        %v663 = vadd.f32 %v583, %v662
        %664 = vdwg.mxu0
        %v667 = vcombine.low %v661, %v663
        %v669 = vadd.f32 %v283, %v667
        %670 = vst [vmem:[%s282] sm:$0xff] %v669
        %s671 = sand.u32 %s163, 1
        %s672 = scalar_lea.sflag [#allocation4], %s671
        %s673 = sand.u32 %s163, 1
        %s674 = smul.addr %s673, 8
        %s675 = scalar_lea.vmem [#allocation7], %s674
        // Predicated region
        $region53: #{tpu_custom_call.1} parent=43 // pred_check
          %p676 = pneg %p173
        $region54: #{tpu_custom_call.1} parent=43 // pred_check_branch
          %678 = sbr.rel (%p676) target = $region56
        $region55: #{tpu_custom_call.1} parent=43 // pred_region
          %s680 = ssub.s32 128, 128
          %681 = vsyncadd %s672, %s680
          %s682 = smul.addr %s24, 2
          %s683 = smul.addr %s682, 64
          %s684 = scalar_lea.hbm %s6, %s683
          %s686 = sshll.u32 %s675, 4
          %s687 = int_to_ptr.vmem [resolvable:$true] %s686
          %689 = dma.vmem_to_hbm [thread:$0]  %s687, 128, %s684, %s672
        $region56: #{tpu_custom_call.1} parent=43 // pred_fallthru
          _
      $region44: #{tpu_custom_call.1} parent=5 // pred_fallthru
        _
      %p690 = scmp.le.s32.totalorder 2, %s19
      // Predicated region
      $region57: #{tpu_custom_call.1} parent=5 // pred_check
        %p691 = pneg %p690
      $region58: #{tpu_custom_call.1} parent=5 // pred_check_branch
        %693 = sbr.rel (%p691) target = $region60
      $region59: #{tpu_custom_call.1} parent=5 // pred_region
        %s694 = ssub.s32 %s19, 2
        // Predicated region
        $region61: #{tpu_custom_call.1} parent=59 // pred_check
          %p695 = pneg %p179
        $region62: #{tpu_custom_call.1} parent=59 // pred_check_branch
          %697 = sbr.rel (%p695) target = $region64
        $region63: #{tpu_custom_call.1} parent=59 // pred_region
          %s698 = sand.u32 %s164, 1
          %s699 = scalar_lea.sflag [#allocation4], %s698
          %s700 = sand.u32 %s164, 1
          %s701 = smul.addr %s700, 8
          %s702 = scalar_lea.vmem [#allocation7], %s701
          %703 = dma.done %s699, 128
        $region64: #{tpu_custom_call.1} parent=59 // pred_fallthru
          _
      $region60: #{tpu_custom_call.1} parent=5 // pred_fallthru
        _
    $region6: #{tpu_custom_call.1} parent=1 // loop_footer
      %s23 = sadd.s32 1, %s19
    $region7: #{tpu_custom_call.1} parent=1 // loop_footer_branch
      %18 = sbr.rel target = $region3
    $region8: #{tpu_custom_call.1} parent=1 // loop_exit
      _
    %704 = vsyncpa [#allocation3], 1
    %s705 = scalar_lea.sflag [#allocation3], 1
    %706 = vsyncpa %s705, 1
    %707 = vsyncpa [#allocation6], 1
    %708 = vsyncpa [#allocation4], 1
    %s709 = scalar_lea.sflag [#allocation4], 1
    %710 = vsyncpa %s709, 1

</llo_original>
